<compile_context>
chip_gen: v6e
topology: v6e:2x2x1
jax: 0.10.0
libtpu: 0.0.40
codegen_flags: <defaults>
</compile_context>

<pallas_src>
import jax
import jax.numpy as jnp
from jax.experimental import pallas as pl
from jax.experimental.pallas import tpu as pltpu


def _generator_kernel(text_ref, noise_ref, w1t_ref, w1n_ref, b1_ref,
                      w2_ref, b2_ref, out_ref):
    """One output tile of the fused 2-layer MLP.

    h        = ReLU(text @ W1t + noise @ W1n + b1)   (recomputed per step; cheap)
    out_tile = Tanh(h @ W2_tile + b2_tile)

    Grid axis 0 tiles the large output-feature dim of the second Linear and is
    stateless -> marked 'parallel' (shardable across v7x's 2 TensorCores).
    """
    wdt = w2_ref.dtype
    h = (jnp.dot(text_ref[...].astype(wdt), w1t_ref[...],
                 preferred_element_type=jnp.float32)
         + jnp.dot(noise_ref[...].astype(wdt), w1n_ref[...],
                   preferred_element_type=jnp.float32)
         + b1_ref[...])
    h = jnp.maximum(h, 0.0)                                   # ReLU(inplace=True)
    y = jnp.dot(h.astype(wdt), w2_ref[...],
                preferred_element_type=jnp.float32) + b2_ref[...]
    out_ref[...] = jnp.tanh(y).astype(out_ref.dtype)


def _cdiv(a, b):
    return -(-a // b)


def _round_up(x, m):
    return ((x + m - 1) // m) * m


def _choose_output_tiling(d_out, max_tn):
    """Pick (tn, grid_steps, d_out_padded).

    tn is a multiple of 128 (lane-dense, unmasked stores). Require >= 2 grid
    steps whenever d_out >= 256 (so both v7x TensorCores get work), prefer an
    even step count (core balance), and prefer exact divisors of d_out (no
    padded W2 bytes streamed from HBM).
    """
    max_tn = max(128, (max_tn // 128) * 128)
    min_steps = 2 if d_out >= 256 else 1
    hi = min(max_tn, d_out) // 128
    for want_even in (True, False):
        for cand in range(hi, 0, -1):
            tn = cand * 128
            if d_out % tn:
                continue
            steps = d_out // tn
            if steps < min_steps or (want_even and steps % 2):
                continue
            return tn, steps, d_out
    # No suitable 128-multiple divisor: pad d_out up to grid * tn (even grid)
    # instead of one huge full-width W2 block that could blow scoped VMEM.
    grid = max(min_steps, _cdiv(d_out, max_tn))
    if grid > 1 and grid % 2:
        grid += 1
    tn = _round_up(_cdiv(d_out, grid), 128)
    grid = _cdiv(d_out, tn)
    if grid > 1 and grid % 2:
        grid += 1
    return tn, grid, grid * tn


def _vmem_limit_bytes(batch, text_dim, noise_dim, hidden, tn, w_bytes):
    resident = (batch * (text_dim + noise_dim) * 4            # text + noise (f32)
                + (text_dim + noise_dim) * hidden * w_bytes   # W1t + W1n
                + hidden * 4)                                  # b1
    streamed = tn * hidden * w_bytes + tn * 4                  # W2 tile + b2 tile
    out_tile = batch * tn * 4
    # Every block (including grid-invariant ones) is double-buffered by
    # default; add 25% + 2 MiB headroom for compiler scratch / semaphores.
    total = 2 * (resident + streamed + out_tile)
    total = int(total * 1.25) + (2 << 20)
    return min(max(total, 4 << 20), 48 << 20)


def generator_forward(text, noise, params, img_size, *,
                      weight_dtype=jnp.bfloat16, max_tn=None):
    """JAX wrapper reproducing Generator.forward.

    weight_dtype=bfloat16 (default) halves the HBM bytes of the dominant W2
    stream; accumulation stays f32 on the MXU, so the deviation from the f32
    torch reference is a small bounded precision trade-off, not a bug.
    # TODO(synk): int8 (v5e/v6e) or fp8-e4m3 (v7x) W2 quantization with
    # per-channel scales would halve HBM bytes again; omitted here because it
    # is chip-specific and changes numerics.
    """
    text = text.astype(jnp.float32)
    noise = noise.astype(jnp.float32)
    B, text_dim = text.shape
    _, noise_dim = noise.shape
    hidden = params["w1"].shape[1]
    d_out = params["w2"].shape[1]
    assert params["w1"].shape[0] == text_dim + noise_dim
    assert d_out == 3 * img_size * img_size

    # --- parameter prep (cast / split / pad).  In a real sampling loop this is
    # constant work that should be hoisted out and done once at init time.
    w1 = params["w1"].astype(weight_dtype)
    w1t = w1[:text_dim]                       # (text_dim, hidden)
    w1n = w1[text_dim:]                       # (noise_dim, hidden)
    b1 = params["b1"].astype(jnp.float32).reshape(1, hidden)
    w2 = params["w2"].astype(weight_dtype)    # (hidden, d_out)
    b2 = params["b2"].astype(jnp.float32).reshape(1, d_out)

    w_bytes = jnp.dtype(weight_dtype).itemsize
    if max_tn is None:
        max_tn = 8192 if w_bytes <= 2 else 4096
    tn, steps, d_out_pad = _choose_output_tiling(d_out, max_tn)
    if d_out_pad != d_out:
        w2 = jnp.pad(w2, ((0, 0), (0, d_out_pad - d_out)))
        b2 = jnp.pad(b2, ((0, 0), (0, d_out_pad - d_out)))

    flat = pl.pallas_call(
        _generator_kernel,
        out_shape=jax.ShapeDtypeStruct((B, d_out_pad), jnp.float32),
        grid_spec=pltpu.PrefetchScalarGridSpec(
            num_scalar_prefetch=0,
            grid=(steps,),
            in_specs=[
                pl.BlockSpec((B, text_dim), lambda j: (0, 0)),       # resident
                pl.BlockSpec((B, noise_dim), lambda j: (0, 0)),      # resident
                pl.BlockSpec((text_dim, hidden), lambda j: (0, 0)),  # W1t resident
                pl.BlockSpec((noise_dim, hidden), lambda j: (0, 0)), # W1n resident
                pl.BlockSpec((1, hidden), lambda j: (0, 0)),         # b1 resident
                pl.BlockSpec((hidden, tn), lambda j: (0, j)),        # W2 tile streamed
                pl.BlockSpec((1, tn), lambda j: (0, j)),             # b2 tile streamed
            ],
            out_specs=pl.BlockSpec((B, tn), lambda j: (0, j)),
        ),
        compiler_params=pltpu.CompilerParams(
            # No cross-step state -> safe to shard across TensorCores.
            dimension_semantics=("parallel",),
            vmem_limit_bytes=_vmem_limit_bytes(B, text_dim, noise_dim,
                                               hidden, tn, w_bytes),
        ),
    )(text, noise, w1t, w1n, b1, w2, b2)

    if d_out_pad != d_out:
        flat = flat[:, :d_out]
    # glue: torch .view(B, 3, img_size, img_size) — row-major reshape, NCHW.
    return flat.reshape(B, 3, img_size, img_size)


def init_generator_params(key, text_dim, noise_dim, img_size, hidden=256):
    """Deterministic init mimicking nn.Linear default (U(-1/sqrt(fan_in), ..))."""
    d_in = text_dim + noise_dim
    d_out = 3 * img_size * img_size
    k1, k2, k3, k4 = jax.random.split(key, 4)
    bound1 = 1.0 / jnp.sqrt(d_in)
    bound2 = 1.0 / jnp.sqrt(hidden)
    return {
        "w1": jax.random.uniform(k1, (d_in, hidden), jnp.float32, -bound1, bound1),
        "b1": jax.random.uniform(k2, (hidden,), jnp.float32, -bound1, bound1),
        "w2": jax.random.uniform(k3, (hidden, d_out), jnp.float32, -bound2, bound2),
        "b2": jax.random.uniform(k4, (d_out,), jnp.float32, -bound2, bound2),
    }


if __name__ == "__main__":
    # Small shapes consistent with the module's forward:
    #   text: (B, text_dim), noise: (B, noise_dim) -> img: (B, 3, img_size, img_size)
    # NOTE: for real use, batch many samples per call — the W2 stream is a
    # fixed cost, so larger B is nearly free per-sample.
    B = 2
    text_dim = 64
    noise_dim = 64
    img_size = 16   # d_out = 3*16*16 = 768 -> tn = 384, 2 parallel grid steps

    key = jax.random.PRNGKey(0)
    k_params, k_text, k_noise = jax.random.split(key, 3)

    params = init_generator_params(k_params, text_dim, noise_dim, img_size)
    text = jax.random.normal(k_text, (B, text_dim), jnp.float32)
    noise = jax.random.normal(k_noise, (B, noise_dim), jnp.float32)

    # Pure-JAX f32 reference.
    x = jnp.concatenate([text, noise], axis=1)
    h = jnp.maximum(x @ params["w1"] + params["b1"], 0.0)
    ref = jnp.tanh(h @ params["w2"] + params["b2"]).reshape(B, 3, img_size, img_size)

    # Exact-precision path (f32 weights): tight match to the reference.
    img_f32 = jax.block_until_ready(
        generator_forward(text, noise, params, img_size, weight_dtype=jnp.float32))
    assert img_f32.shape == (B, 3, img_size, img_size)
    assert jnp.allclose(img_f32, ref, atol=1e-4, rtol=1e-4)

    # Default fast path: bf16 weight streaming, f32 accumulation.
    img = jax.block_until_ready(generator_forward(text, noise, params, img_size))
    assert img.shape == (B, 3, img_size, img_size)
    assert jnp.allclose(img, ref, atol=2e-2, rtol=2e-2)

    print("KERNEL_OK")
</pallas_src>

<mosaic_0001>
module attributes {stable_mosaic.version = 11 : i64} {
  func.func @_generator_kernel(%arg0: i32, %arg1: memref<2x64xf32, #tpu.memory_space<vmem>>, %arg2: memref<2x64xf32, #tpu.memory_space<vmem>>, %arg3: memref<64x256xf32, #tpu.memory_space<vmem>>, %arg4: memref<64x256xf32, #tpu.memory_space<vmem>>, %arg5: memref<1x256xf32, #tpu.memory_space<vmem>>, %arg6: memref<256x384xf32, #tpu.memory_space<vmem>>, %arg7: memref<1x384xf32, #tpu.memory_space<vmem>>, %arg8: memref<2x384xf32, #tpu.memory_space<vmem>>) attributes {dimension_semantics = [#tpu.dimension_semantics<parallel>], iteration_bounds = array<i64: 2>, scalar_prefetch = 0 : i64, scratch_operands = 0 : i64, tpu.core_type = #tpu.core_type<tc>, window_params = [{pipeline_mode = #tpu.pipeline_mode<synchronous>, transform_indices = @transform_0, window_bounds = array<i64: 2, 64>}, {pipeline_mode = #tpu.pipeline_mode<synchronous>, transform_indices = @transform_1, window_bounds = array<i64: 2, 64>}, {pipeline_mode = #tpu.pipeline_mode<synchronous>, transform_indices = @transform_2, window_bounds = array<i64: 64, 256>}, {pipeline_mode = #tpu.pipeline_mode<synchronous>, transform_indices = @transform_3, window_bounds = array<i64: 64, 256>}, {pipeline_mode = #tpu.pipeline_mode<synchronous>, transform_indices = @transform_4, window_bounds = array<i64: 1, 256>}, {transform_indices = @transform_5, window_bounds = array<i64: 256, 384>}, {transform_indices = @transform_6, window_bounds = array<i64: 1, 384>}, {transform_indices = @transform_7, window_bounds = array<i64: 2, 384>}]} {
    %c0 = arith.constant 0 : index
    %c0_0 = arith.constant 0 : index
    %0 = vector.load %arg1[%c0, %c0_0] : memref<2x64xf32, #tpu.memory_space<vmem>>, vector<2x64xf32>
    %c0_1 = arith.constant 0 : index
    %c0_2 = arith.constant 0 : index
    %1 = vector.load %arg3[%c0_1, %c0_2] : memref<64x256xf32, #tpu.memory_space<vmem>>, vector<64x256xf32>
    %cst = arith.constant dense<0.000000e+00> : vector<2x256xf32>
    %2 = tpu.matmul %0, %1, %cst {dimension_numbers = #tpu.dot_dimension_numbers<[1], [0], [0], [1], [0, 0, 1, 1], [], []>} : vector<2x64xf32>, vector<64x256xf32>, vector<2x256xf32> -> vector<2x256xf32>
    %c0_3 = arith.constant 0 : index
    %c0_4 = arith.constant 0 : index
    %3 = vector.load %arg2[%c0_3, %c0_4] : memref<2x64xf32, #tpu.memory_space<vmem>>, vector<2x64xf32>
    %c0_5 = arith.constant 0 : index
    %c0_6 = arith.constant 0 : index
    %4 = vector.load %arg4[%c0_5, %c0_6] : memref<64x256xf32, #tpu.memory_space<vmem>>, vector<64x256xf32>
    %cst_7 = arith.constant dense<0.000000e+00> : vector<2x256xf32>
    %5 = tpu.matmul %3, %4, %cst_7 {dimension_numbers = #tpu.dot_dimension_numbers<[1], [0], [0], [1], [0, 0, 1, 1], [], []>} : vector<2x64xf32>, vector<64x256xf32>, vector<2x256xf32> -> vector<2x256xf32>
    %6 = arith.addf %2, %5 : vector<2x256xf32>
    %c0_8 = arith.constant 0 : index
    %c0_9 = arith.constant 0 : index
    %7 = vector.load %arg5[%c0_8, %c0_9] : memref<1x256xf32, #tpu.memory_space<vmem>>, vector<1x256xf32>
    %8 = vector.broadcast %7 : vector<1x256xf32> to vector<2x256xf32>
    %9 = arith.addf %6, %8 : vector<2x256xf32>
    %cst_10 = arith.constant 0.000000e+00 : f32
    %10 = vector.broadcast %cst_10 : f32 to vector<2x256xf32>
    %11 = arith.maximumf %9, %10 : vector<2x256xf32>
    %c0_11 = arith.constant 0 : index
    %c0_12 = arith.constant 0 : index
    %12 = vector.load %arg6[%c0_11, %c0_12] : memref<256x384xf32, #tpu.memory_space<vmem>>, vector<256x384xf32>
    %cst_13 = arith.constant dense<0.000000e+00> : vector<2x384xf32>
    %13 = tpu.matmul %11, %12, %cst_13 {dimension_numbers = #tpu.dot_dimension_numbers<[1], [0], [0], [1], [0, 0, 1, 1], [], []>} : vector<2x256xf32>, vector<256x384xf32>, vector<2x384xf32> -> vector<2x384xf32>
    %c0_14 = arith.constant 0 : index
    %c0_15 = arith.constant 0 : index
    %14 = vector.load %arg7[%c0_14, %c0_15] : memref<1x384xf32, #tpu.memory_space<vmem>>, vector<1x384xf32>
    %15 = vector.broadcast %14 : vector<1x384xf32> to vector<2x384xf32>
    %16 = arith.addf %13, %15 : vector<2x384xf32>
    %17 = math.tanh %16 : vector<2x384xf32>
    %c0_16 = arith.constant 0 : index
    %c0_17 = arith.constant 0 : index
    %18 = vector.load %arg8[%c0_16, %c0_17] : memref<2x384xf32, #tpu.memory_space<vmem>>, vector<2x384xf32>
    tpu.vector_store %arg8[%c0_16, %c0_17], %17 {strides = array<i32>} : memref<2x384xf32, #tpu.memory_space<vmem>>, vector<2x384xf32>,
    return
  }
  func.func @transform_0(%arg0: i32) -> (i32, i32) {
    %c0_i32 = arith.constant 0 : i32
    %c0_i32_0 = arith.constant 0 : i32
    %c0_i32_1 = arith.constant 0 : i32
    return %c0_i32, %c0_i32_0 : i32, i32
  }
  func.func @transform_1(%arg0: i32) -> (i32, i32) {
    %c0_i32 = arith.constant 0 : i32
    %c0_i32_0 = arith.constant 0 : i32
    %c0_i32_1 = arith.constant 0 : i32
    return %c0_i32, %c0_i32_0 : i32, i32
  }
  func.func @transform_2(%arg0: i32) -> (i32, i32) {
    %c0_i32 = arith.constant 0 : i32
    %c0_i32_0 = arith.constant 0 : i32
    %c0_i32_1 = arith.constant 0 : i32
    return %c0_i32, %c0_i32_0 : i32, i32
  }
  func.func @transform_3(%arg0: i32) -> (i32, i32) {
    %c0_i32 = arith.constant 0 : i32
    %c0_i32_0 = arith.constant 0 : i32
    %c0_i32_1 = arith.constant 0 : i32
    return %c0_i32, %c0_i32_0 : i32, i32
  }
  func.func @transform_4(%arg0: i32) -> (i32, i32) {
    %c0_i32 = arith.constant 0 : i32
    %c0_i32_0 = arith.constant 0 : i32
    %c0_i32_1 = arith.constant 0 : i32
    return %c0_i32, %c0_i32_0 : i32, i32
  }
  func.func @transform_5(%arg0: i32) -> (i32, i32) {
    %c0_i32 = arith.constant 0 : i32
    %c0_i32_0 = arith.constant 0 : i32
    return %c0_i32, %arg0 : i32, i32
  }
  func.func @transform_6(%arg0: i32) -> (i32, i32) {
    %c0_i32 = arith.constant 0 : i32
    %c0_i32_0 = arith.constant 0 : i32
    return %c0_i32, %arg0 : i32, i32
  }
  func.func @transform_7(%arg0: i32) -> (i32, i32) {
    %c0_i32 = arith.constant 0 : i32
    %c0_i32_0 = arith.constant 0 : i32
    return %c0_i32, %arg0 : i32, i32
  }
}

</mosaic_0001>

<llo_original>
// kernel: tpu_custom_call.1
$region0: #{tpu_custom_call.1}
  #allocation0 [shape = 'u32[]', space=smem, size = 0x4, offset = 0x4, fixed_abs, tag = 'smem constant byte address 0x4 - core index']
  #allocation1 [shape = 'u32[144,128]{1,0:T(1,128)}', space=vmem, size = 0x12000, scoped, tag = 'internal scratch']
  %s0 = inlined_call_operand.hbm [shape: f32[2,64], index: 0, kind: input, shape index: {}]
  %s1 = inlined_call_operand.hbm [shape: f32[2,64], index: 1, kind: input, shape index: {}]
  %s2 = inlined_call_operand.hbm [shape: f32[64,256], index: 2, kind: input, shape index: {}]
  %s3 = inlined_call_operand.hbm [shape: f32[64,256], index: 3, kind: input, shape index: {}]
  %s4 = inlined_call_operand.vmem [shape: f32[1,256], index: 4, kind: input, shape index: {}]
  %s5 = inlined_call_operand.hbm [shape: f32[256,768], index: 5, kind: input, shape index: {}]
  %s6 = inlined_call_operand.vmem [shape: f32[1,768], index: 6, kind: input, shape index: {}]
  %s7 = inlined_call_operand.hbm [shape: f32[2,768], index: 7, kind: output, shape index: {}]
  %s8 = sld [smem:[#allocation0]]
  $region81: #{tpu_custom_call.1} parent=0
    _
  %s10 = ssub.s32 1, %s8
  %s11 = scalar_select 0, %s10, %s8
  $region1: #{tpu_custom_call.1} parent=0
    #allocation2 [shape = 'u8[1024]{0}', space=vmem, size = 0x400, scoped, tag = 'input window, operand 0, single buffered']
    #allocation3 [shape = 's32[2]{0}', space=sflag, size = 0x8, scoped, tag = 'scoped memory for tpu_custom_call.1']
    #allocation4 [shape = 's32[2]{0}', space=sflag, size = 0x8, scoped, tag = 'scoped memory for tpu_custom_call.1']
    #allocation5 [shape = 'u8[1024]{0}', space=vmem, size = 0x400, scoped, tag = 'input window, operand 1, single buffered']
    #allocation6 [shape = 's32[1]{0}', space=sflag, size = 0x4, scoped, tag = 'scoped memory for tpu_custom_call.1']
    #allocation7 [shape = 'u8[65536]{0}', space=vmem, size = 0x10000, scoped, tag = 'input window, operand 2, single buffered']
    #allocation8 [shape = 'u8[65536]{0}', space=vmem, size = 0x10000, scoped, tag = 'input window, operand 3, single buffered']
    #allocation9 [shape = 's32[1]{0}', space=sflag, size = 0x4, scoped, tag = 'scoped memory for tpu_custom_call.1']
    #allocation10 [shape = 'u8[786432]{0}', space=vmem, size = 0xc0000, scoped, tag = 'input window, operand 5']
    #allocation11 [shape = 'u8[6144]{0}', space=vmem, size = 0x1800, scoped, tag = 'output window, operand 0']
    %12 = vsyncpa [#allocation3], 0
    %13 = vsyncpa [#allocation6], 0
    %14 = vsyncpa [#allocation9], 0
    %15 = vsyncpa [#allocation4], 0
    %s16 = scalar_lea.sflag [#allocation4], 1
    %17 = vsyncpa %s16, 0
    loop: start=0, step=1, limit=4
    $region2: #{tpu_custom_call.1} parent=1 // loop_pre_header
      _
    $region3: #{tpu_custom_call.1} parent=1 // loop_header
      %s19 = sphi 0, %s23
      %p20 = scmp.ge.s32.totalorder %s19, 4
      %s27 = sphi 0, %s27
      %s29 = sphi 0, %s27
      %s30 = sphi 0, %s29
      %s44 = sphi 0, %s30
      %s48 = sphi 0, %s48
      %s50 = sphi 0, %s48
      %s51 = sphi 0, %s50
      %s65 = sphi 0, %s51
      %s69 = sphi 0, %s69
      %s71 = sphi 0, %s69
      %s72 = sphi 0, %s71
      %s86 = sphi 0, %s72
      %s90 = sphi 0, %s90
      %s92 = sphi 0, %s90
      %s93 = sphi 0, %s92
      %s107 = sphi 0, %s93
      %s111 = sphi 0, %s111
      %s113 = sphi 0, %s111
      %s114 = sphi 0, %s113
      %s128 = sphi 0, %s114
      %s134 = sphi 0, %s136
      %s137 = sphi 0, %s134
      %s138 = sphi 0, %s137
      %s154 = sphi 0, %s138
      %s160 = sphi 0, %s162
      %s163 = sphi 0, %s160
      %s164 = sphi 0, %s163
      %s180 = sphi 0, %s164
      %s186 = sphi 0, %s188
      %s189 = sphi 0, %s186
      %s190 = sphi 0, %s189
      %s206 = sphi 0, %s190
    $region4: #{tpu_custom_call.1} parent=1 // loop_header_branch
      %22 = sbr.rel (%p20) target = $region8
    $region5: #{tpu_custom_call.1} parent=1 // loop_body
      %s24 = ssub.s32 %s19, 1
      %s25 = ssub.s32 %s19, 2
      %s26 = sadd.s32 %s19, 1
      %s28 = sadd.s32 %s27, 1
      %p31 = scmp.eq.s32.totalorder %s19, 1
      %p32 = scmp.ne.s32.totalorder %s27, %s29
      %p33 = scmp.eq.s32.totalorder %s19, 0
      %p34 = por %p32, %p33
      %p35 = scmp.ne.s32.totalorder %s27, %s29
      %p36 = scmp.eq.s32.totalorder %s24, 1
      %p37 = por %p35, %p36
      %p38 = scmp.ne.s32.totalorder %s29, %s30
      %p39 = scmp.eq.s32.totalorder %s24, 0
      %p40 = por %p38, %p39
      %p41 = scmp.ne.s32.totalorder %s29, %s30
      %p42 = scmp.eq.s32.totalorder %s25, 1
      %p43 = por %p41, %p42
      %p45 = scmp.ne.s32.totalorder %s30, %s44
      %p46 = scmp.eq.s32.totalorder %s25, 0
      %p47 = por %p45, %p46
      %s49 = sadd.s32 %s48, 1
      %p52 = scmp.eq.s32.totalorder %s19, 1
      %p53 = scmp.ne.s32.totalorder %s48, %s50
      %p54 = scmp.eq.s32.totalorder %s19, 0
      %p55 = por %p53, %p54
      %p56 = scmp.ne.s32.totalorder %s48, %s50
      %p57 = scmp.eq.s32.totalorder %s24, 1
      %p58 = por %p56, %p57
      %p59 = scmp.ne.s32.totalorder %s50, %s51
      %p60 = scmp.eq.s32.totalorder %s24, 0
      %p61 = por %p59, %p60
      %p62 = scmp.ne.s32.totalorder %s50, %s51
      %p63 = scmp.eq.s32.totalorder %s25, 1
      %p64 = por %p62, %p63
      %p66 = scmp.ne.s32.totalorder %s51, %s65
      %p67 = scmp.eq.s32.totalorder %s25, 0
      %p68 = por %p66, %p67
      %s70 = sadd.s32 %s69, 1
      %p73 = scmp.eq.s32.totalorder %s19, 1
      %p74 = scmp.ne.s32.totalorder %s69, %s71
      %p75 = scmp.eq.s32.totalorder %s19, 0
      %p76 = por %p74, %p75
      %p77 = scmp.ne.s32.totalorder %s69, %s71
      %p78 = scmp.eq.s32.totalorder %s24, 1
      %p79 = por %p77, %p78
      %p80 = scmp.ne.s32.totalorder %s71, %s72
      %p81 = scmp.eq.s32.totalorder %s24, 0
      %p82 = por %p80, %p81
      %p83 = scmp.ne.s32.totalorder %s71, %s72
      %p84 = scmp.eq.s32.totalorder %s25, 1
      %p85 = por %p83, %p84
      %p87 = scmp.ne.s32.totalorder %s72, %s86
      %p88 = scmp.eq.s32.totalorder %s25, 0
      %p89 = por %p87, %p88
      %s91 = sadd.s32 %s90, 1
      %p94 = scmp.eq.s32.totalorder %s19, 1
      %p95 = scmp.ne.s32.totalorder %s90, %s92
      %p96 = scmp.eq.s32.totalorder %s19, 0
      %p97 = por %p95, %p96
      %p98 = scmp.ne.s32.totalorder %s90, %s92
      %p99 = scmp.eq.s32.totalorder %s24, 1
      %p100 = por %p98, %p99
      %p101 = scmp.ne.s32.totalorder %s92, %s93
      %p102 = scmp.eq.s32.totalorder %s24, 0
      %p103 = por %p101, %p102
      %p104 = scmp.ne.s32.totalorder %s92, %s93
      %p105 = scmp.eq.s32.totalorder %s25, 1
      %p106 = por %p104, %p105
      %p108 = scmp.ne.s32.totalorder %s93, %s107
      %p109 = scmp.eq.s32.totalorder %s25, 0
      %p110 = por %p108, %p109
      %s112 = sadd.s32 %s111, 1
      %p115 = scmp.eq.s32.totalorder %s19, 1
      %p116 = scmp.ne.s32.totalorder %s111, %s113
      %p117 = scmp.eq.s32.totalorder %s19, 0
      %p118 = por %p116, %p117
      %p119 = scmp.ne.s32.totalorder %s111, %s113
      %p120 = scmp.eq.s32.totalorder %s24, 1
      %p121 = por %p119, %p120
      %p122 = scmp.ne.s32.totalorder %s113, %s114
      %p123 = scmp.eq.s32.totalorder %s24, 0
      %p124 = por %p122, %p123
      %p125 = scmp.ne.s32.totalorder %s113, %s114
      %p126 = scmp.eq.s32.totalorder %s25, 1
      %p127 = por %p125, %p126
      %p129 = scmp.ne.s32.totalorder %s114, %s128
      %p130 = scmp.eq.s32.totalorder %s25, 0
      %p131 = por %p129, %p130
      %s132 = ssub.s32 %s19, %s26
      %p133 = scmp.eq.s32.totalorder %s132, 0
      %s135 = sadd.s32 %s134, 1
      %s136 = scalar_select %p133, %s134, %s135
      %p139 = pneg %p133
      %p140 = scmp.eq.s32.totalorder %s19, 1
      %p141 = por %p139, %p140
      %p142 = scmp.ne.s32.totalorder %s134, %s137
      %p143 = scmp.eq.s32.totalorder %s19, 0
      %p144 = por %p142, %p143
      %p145 = scmp.ne.s32.totalorder %s134, %s137
      %p146 = scmp.eq.s32.totalorder %s24, 1
      %p147 = por %p145, %p146
      %p148 = scmp.ne.s32.totalorder %s137, %s138
      %p149 = scmp.eq.s32.totalorder %s24, 0
      %p150 = por %p148, %p149
      %p151 = scmp.ne.s32.totalorder %s137, %s138
      %p152 = scmp.eq.s32.totalorder %s25, 1
      %p153 = por %p151, %p152
      %p155 = scmp.ne.s32.totalorder %s138, %s154
      %p156 = scmp.eq.s32.totalorder %s25, 0
      %p157 = por %p155, %p156
      %s158 = ssub.s32 %s19, %s26
      %p159 = scmp.eq.s32.totalorder %s158, 0
      %s161 = sadd.s32 %s160, 1
      %s162 = scalar_select %p159, %s160, %s161
      %p165 = pneg %p159
      %p166 = scmp.eq.s32.totalorder %s19, 1
      %p167 = por %p165, %p166
      %p168 = scmp.ne.s32.totalorder %s160, %s163
      %p169 = scmp.eq.s32.totalorder %s19, 0
      %p170 = por %p168, %p169
      %p171 = scmp.ne.s32.totalorder %s160, %s163
      %p172 = scmp.eq.s32.totalorder %s24, 1
      %p173 = por %p171, %p172
      %p174 = scmp.ne.s32.totalorder %s163, %s164
      %p175 = scmp.eq.s32.totalorder %s24, 0
      %p176 = por %p174, %p175
      %p177 = scmp.ne.s32.totalorder %s163, %s164
      %p178 = scmp.eq.s32.totalorder %s25, 1
      %p179 = por %p177, %p178
      %p181 = scmp.ne.s32.totalorder %s164, %s180
      %p182 = scmp.eq.s32.totalorder %s25, 0
      %p183 = por %p181, %p182
      %s184 = ssub.s32 %s19, %s26
      %p185 = scmp.eq.s32.totalorder %s184, 0
      %s187 = sadd.s32 %s186, 1
      %s188 = scalar_select %p185, %s186, %s187
      %p191 = pneg %p185
      %p192 = scmp.eq.s32.totalorder %s19, 1
      %p193 = por %p191, %p192
      %p194 = scmp.ne.s32.totalorder %s186, %s189
      %p195 = scmp.eq.s32.totalorder %s19, 0
      %p196 = por %p194, %p195
      %p197 = scmp.ne.s32.totalorder %s186, %s189
      %p198 = scmp.eq.s32.totalorder %s24, 1
      %p199 = por %p197, %p198
      %p200 = scmp.ne.s32.totalorder %s189, %s190
      %p201 = scmp.eq.s32.totalorder %s24, 0
      %p202 = por %p200, %p201
      %p203 = scmp.ne.s32.totalorder %s189, %s190
      %p204 = scmp.eq.s32.totalorder %s25, 1
      %p205 = por %p203, %p204
      %p207 = scmp.ne.s32.totalorder %s190, %s206
      %p208 = scmp.eq.s32.totalorder %s25, 0
      %p209 = por %p207, %p208
      %p210 = scmp.le.s32.totalorder 1, %s19
      %p211 = scmp.lt.s32.totalorder %s19, 3
      %p212 = pnand %p210, %p211
      %p213 = pneg %p212
      // Predicated region
      $region9: #{tpu_custom_call.1} parent=5 // pred_check
        _
      $region10: #{tpu_custom_call.1} parent=5 // pred_check_branch
        %215 = sbr.rel (%p212) target = $region12
      $region11: #{tpu_custom_call.1} parent=5 // pred_region
        %s216 = ssub.s32 %s19, 1
        // Predicated region
        $region13: #{tpu_custom_call.1} parent=11 // pred_check
          %p217 = pneg %p40
        $region14: #{tpu_custom_call.1} parent=11 // pred_check_branch
          %219 = sbr.rel (%p217) target = $region16
        $region15: #{tpu_custom_call.1} parent=11 // pred_region
          %s221 = ssub.s32 32, 32
          %222 = vsyncadd [#allocation3], %s221
          %s224 = sshll.u32 [#allocation2], 4
          %s225 = int_to_ptr.vmem [resolvable:$true] %s224
          %227 = dma.hbm_to_vmem [thread:$0]  %s0, 32, %s225, [#allocation3]
        $region16: #{tpu_custom_call.1} parent=11 // pred_fallthru
          _
        // Predicated region
        $region17: #{tpu_custom_call.1} parent=11 // pred_check
          %p228 = pneg %p61
        $region18: #{tpu_custom_call.1} parent=11 // pred_check_branch
          %230 = sbr.rel (%p228) target = $region20
        $region19: #{tpu_custom_call.1} parent=11 // pred_region
          %s232 = ssub.s32 32, 32
          %233 = vsyncadd [#allocation6], %s232
          %s235 = sshll.u32 [#allocation5], 4
          %s236 = int_to_ptr.vmem [resolvable:$true] %s235
          %238 = dma.hbm_to_vmem [thread:$0]  %s1, 32, %s236, [#allocation6]
        $region20: #{tpu_custom_call.1} parent=11 // pred_fallthru
          _
        // Predicated region
        $region21: #{tpu_custom_call.1} parent=11 // pred_check
          %p239 = pneg %p82
        $region22: #{tpu_custom_call.1} parent=11 // pred_check_branch
          %241 = sbr.rel (%p239) target = $region24
        $region23: #{tpu_custom_call.1} parent=11 // pred_region
          %s243 = ssub.s32 2048, 2048
          %244 = vsyncadd [#allocation6], %s243
          %s245 = sshll.u32 [#allocation7], 4
          %s246 = int_to_ptr.vmem [resolvable:$true] %s245
          %251 = dma.hbm_to_vmem [thread:$0]  %s2, 2048, %s246, [#allocation6], 256, 256, 16
        $region24: #{tpu_custom_call.1} parent=11 // pred_fallthru
          _
        // Predicated region
        $region25: #{tpu_custom_call.1} parent=11 // pred_check
          %p252 = pneg %p103
        $region26: #{tpu_custom_call.1} parent=11 // pred_check_branch
          %254 = sbr.rel (%p252) target = $region28
        $region27: #{tpu_custom_call.1} parent=11 // pred_region
          %s256 = ssub.s32 2048, 2048
          %257 = vsyncadd [#allocation9], %s256
          %s258 = sshll.u32 [#allocation8], 4
          %s259 = int_to_ptr.vmem [resolvable:$true] %s258
          %264 = dma.hbm_to_vmem [thread:$0]  %s3, 2048, %s259, [#allocation9], 256, 256, 16
        $region28: #{tpu_custom_call.1} parent=11 // pred_fallthru
          _
        // Predicated region
        $region29: #{tpu_custom_call.1} parent=11 // pred_check
          %p265 = pneg %p124
        $region30: #{tpu_custom_call.1} parent=11 // pred_check_branch
          %267 = sbr.rel (%p265) target = $region32
        $region31: #{tpu_custom_call.1} parent=11 // pred_region
          _
        $region32: #{tpu_custom_call.1} parent=11 // pred_fallthru
          _
      $region12: #{tpu_custom_call.1} parent=5 // pred_fallthru
        _
      %p268 = scmp.lt.s32.totalorder %s19, 2
      // Predicated region
      $region33: #{tpu_custom_call.1} parent=5 // pred_check
        %p269 = pneg %p268
      $region34: #{tpu_custom_call.1} parent=5 // pred_check_branch
        %271 = sbr.rel (%p269) target = $region36
      $region35: #{tpu_custom_call.1} parent=5 // pred_region
        // Predicated region
        $region37: #{tpu_custom_call.1} parent=35 // pred_check
          %p272 = pneg %p144
        $region38: #{tpu_custom_call.1} parent=35 // pred_check_branch
          %274 = sbr.rel (%p272) target = $region40
        $region39: #{tpu_custom_call.1} parent=35 // pred_region
          %s275 = sand.u32 %s19, 1
          %s276 = scalar_lea.sflag [#allocation3], %s275
          %s277 = sand.u32 %s134, 1
          %s278 = smul.addr %s277, 768
          %s279 = scalar_lea.vmem [#allocation10], %s278
          %s280 = smul.u32 3, %s19
          %s282 = ssub.s32 12288, 12288
          %283 = vsyncadd %s276, %s282
          %s284 = smul.addr %s280, 128
          %s285 = scalar_lea.hbm %s5, %s284
          %s286 = sshll.u32 %s279, 4
          %s287 = int_to_ptr.vmem [resolvable:$true] %s286
          %292 = dma.hbm_to_vmem [thread:$0]  %s285, 12288, %s287, %s276, 768, 384, 24
        $region40: #{tpu_custom_call.1} parent=35 // pred_fallthru
          _
        // Predicated region
        $region41: #{tpu_custom_call.1} parent=35 // pred_check
          %p293 = pneg %p170
        $region42: #{tpu_custom_call.1} parent=35 // pred_check_branch
          %295 = sbr.rel (%p293) target = $region44
        $region43: #{tpu_custom_call.1} parent=35 // pred_region
          %s296 = smul.u32 3, %s19
          %p297 = scmp.lt.s32.totalorder %s296, 5
          %s298 = scalar_select %p297, %s296, 5
          %s299 = scalar_lea.vmem %s6, %s298
          %s300 = smul.u32 3, %s19
        $region44: #{tpu_custom_call.1} parent=35 // pred_fallthru
          _
      $region36: #{tpu_custom_call.1} parent=5 // pred_fallthru
        _
      %p301 = scmp.le.s32.totalorder 1, %s19
      %p302 = scmp.lt.s32.totalorder %s19, 3
      %p303 = pnand %p301, %p302
      %p304 = pneg %p303
      // Predicated region
      $region45: #{tpu_custom_call.1} parent=5 // pred_check
        _
      $region46: #{tpu_custom_call.1} parent=5 // pred_check_branch
        %306 = sbr.rel (%p303) target = $region48
      $region47: #{tpu_custom_call.1} parent=5 // pred_region
        %s307 = ssub.s32 %s19, 1
        // Predicated region
        $region49: #{tpu_custom_call.1} parent=47 // pred_check
          %p308 = pneg %p40
        $region50: #{tpu_custom_call.1} parent=47 // pred_check_branch
          %310 = sbr.rel (%p308) target = $region52
        $region51: #{tpu_custom_call.1} parent=47 // pred_region
          %311 = dma.done [#allocation3], 32
        $region52: #{tpu_custom_call.1} parent=47 // pred_fallthru
          _
        // Predicated region
        $region53: #{tpu_custom_call.1} parent=47 // pred_check
          %p312 = pneg %p61
        $region54: #{tpu_custom_call.1} parent=47 // pred_check_branch
          %314 = sbr.rel (%p312) target = $region56
        $region55: #{tpu_custom_call.1} parent=47 // pred_region
          %315 = dma.done [#allocation6], 32
        $region56: #{tpu_custom_call.1} parent=47 // pred_fallthru
          _
        // Predicated region
        $region57: #{tpu_custom_call.1} parent=47 // pred_check
          %p316 = pneg %p82
        $region58: #{tpu_custom_call.1} parent=47 // pred_check_branch
          %318 = sbr.rel (%p316) target = $region60
        $region59: #{tpu_custom_call.1} parent=47 // pred_region
          %319 = dma.done [#allocation6], 2048
        $region60: #{tpu_custom_call.1} parent=47 // pred_fallthru
          _
        // Predicated region
        $region61: #{tpu_custom_call.1} parent=47 // pred_check
          %p320 = pneg %p103
        $region62: #{tpu_custom_call.1} parent=47 // pred_check_branch
          %322 = sbr.rel (%p320) target = $region64
        $region63: #{tpu_custom_call.1} parent=47 // pred_region
          %323 = dma.done [#allocation9], 2048
        $region64: #{tpu_custom_call.1} parent=47 // pred_fallthru
          _
        %s324 = sand.u32 %s24, 1
        %s325 = scalar_lea.sflag [#allocation3], %s324
        %s326 = sand.u32 %s137, 1
        %s327 = smul.addr %s326, 768
        %s328 = scalar_lea.vmem [#allocation10], %s327
        // Predicated region
        $region65: #{tpu_custom_call.1} parent=47 // pred_check
          %p329 = pneg %p150
        $region66: #{tpu_custom_call.1} parent=47 // pred_check_branch
          %331 = sbr.rel (%p329) target = $region68
        $region67: #{tpu_custom_call.1} parent=47 // pred_region
          %332 = dma.done %s325, 12288
        $region68: #{tpu_custom_call.1} parent=47 // pred_fallthru
          _
        %p333 = pneg %p40
        %p334 = pneg %p37
        %p335 = pneg %p61
        %p336 = pneg %p58
        %p337 = pneg %p82
        %p338 = pneg %p79
        %p339 = pneg %p103
        %p340 = pneg %p100
        %p341 = pneg %p124
        %p342 = pneg %p121
        %s343 = sand.u32 %s24, 1
        %s344 = scalar_lea.sflag [#allocation3], %s343
        %s345 = sand.u32 %s137, 1
        %s346 = smul.addr %s345, 768
        %s347 = scalar_lea.vmem [#allocation10], %s346
        %p348 = pneg %p150
        %p349 = pneg %p147
        %s350 = smul.u32 3, %s24
        %p351 = scmp.lt.s32.totalorder %s350, 5
        %s352 = scalar_select %p351, %s350, 5
        %s353 = scalar_lea.vmem %s6, %s352
        %p354 = pneg %p176
        %p355 = pneg %p173
        %p356 = pneg %p202
        %p357 = pneg %p199
        %s358 = sand.u32 %s189, 1
        %s359 = scalar_lea.sflag [#allocation4], %s358
        %s360 = sand.u32 %s189, 1
        %s361 = smul.addr %s360, 6
        %s362 = scalar_lea.vmem [#allocation11], %s361
        %s363 = smul.u32 3, %s24
        %s364 = smul.u32 3, %s24
        %p365 = scmp.lt.s32.totalorder %s364, 5
        %s366 = scalar_select %p365, %s364, 5
        %s367 = scalar_lea.vmem %s6, %s366
        %s368 = smul.u32 3, %s24
        %s369 = smul.u32 3, %s24
        %v370 = vld [vmem:[#allocation2] sm:$0x3]
        %v371 = vld [vmem:[#allocation7] sm:$0xff]
        %v372 = vld [vmem:[#allocation7 + $0x8] sm:$0xff]
        %v373 = vld [vmem:[#allocation7 + $0x10] sm:$0xff]
        %v374 = vld [vmem:[#allocation7 + $0x18] sm:$0xff]
        %v375 = vld [vmem:[#allocation7 + $0x20] sm:$0xff]
        %v376 = vld [vmem:[#allocation7 + $0x28] sm:$0xff]
        %v377 = vld [vmem:[#allocation7 + $0x30] sm:$0xff]
        %v378 = vld [vmem:[#allocation7 + $0x38] sm:$0xff]
        %v379 = vld [vmem:[#allocation7 + $0x40] sm:$0xff]
        %v380 = vld [vmem:[#allocation7 + $0x48] sm:$0xff]
        %v381 = vld [vmem:[#allocation7 + $0x50] sm:$0xff]
        %v382 = vld [vmem:[#allocation7 + $0x58] sm:$0xff]
        %v383 = vld [vmem:[#allocation7 + $0x60] sm:$0xff]
        %v384 = vld [vmem:[#allocation7 + $0x68] sm:$0xff]
        %v385 = vld [vmem:[#allocation7 + $0x70] sm:$0xff]
        %v386 = vld [vmem:[#allocation7 + $0x78] sm:$0xff]
        %v387 = vld [vmem:[#allocation5] sm:$0x3]
        %v388 = vld [vmem:[#allocation8] sm:$0xff]
        %v389 = vld [vmem:[#allocation8 + $0x8] sm:$0xff]
        %v390 = vld [vmem:[#allocation8 + $0x10] sm:$0xff]
        %v391 = vld [vmem:[#allocation8 + $0x18] sm:$0xff]
        %v392 = vld [vmem:[#allocation8 + $0x20] sm:$0xff]
        %v393 = vld [vmem:[#allocation8 + $0x28] sm:$0xff]
        %v394 = vld [vmem:[#allocation8 + $0x30] sm:$0xff]
        %v395 = vld [vmem:[#allocation8 + $0x38] sm:$0xff]
        %v396 = vld [vmem:[#allocation8 + $0x40] sm:$0xff]
        %v397 = vld [vmem:[#allocation8 + $0x48] sm:$0xff]
        %v398 = vld [vmem:[#allocation8 + $0x50] sm:$0xff]
        %v399 = vld [vmem:[#allocation8 + $0x58] sm:$0xff]
        %v400 = vld [vmem:[#allocation8 + $0x60] sm:$0xff]
        %v401 = vld [vmem:[#allocation8 + $0x68] sm:$0xff]
        %v402 = vld [vmem:[#allocation8 + $0x70] sm:$0xff]
        %v403 = vld [vmem:[#allocation8 + $0x78] sm:$0xff]
        %vm404 = vcmask 523264
        %v406 = vsel %vm404, %v387, 0
        %408 = vmatprep.subr.mxu0 0.0
        %409 = vmatpush1.msra.mxu0 0.0
        %410 = vmatprep.subr.mxu0 0.0
        %411 = vmatpush1.msra.mxu0 0.0
        %412 = vmatprep.subr.mxu0 0.0
        %413 = vmatpush1.msra.mxu0 0.0
        %414 = vmatprep.subr.mxu0 0.0
        %415 = vmatpush1.msra.mxu0 0.0
        %416 = vmatprep.subr.mxu0 0.0
        %417 = vmatpush1.msra.mxu0 0.0
        %418 = vmatprep.subr.mxu0 0.0
        %419 = vmatpush1.msra.mxu0 0.0
        %420 = vmatprep.subr.mxu0 0.0
        %421 = vmatpush1.msra.mxu0 0.0
        %422 = vmatprep.subr.mxu0 0.0
        %423 = vmatpush1.msra.mxu0 0.0
        %424 = vmatprep.subr.mxu0 %v403
        %425 = vmatpush1.msra.mxu0 %v402
        %426 = vmatprep.subr.mxu0 %v401
        %427 = vmatpush1.msra.mxu0 %v400
        %428 = vmatprep.subr.mxu0 %v399
        %429 = vmatpush1.msra.mxu0 %v398
        %430 = vmatprep.subr.mxu0 %v397
        %431 = vmatpush1.msra.mxu0 %v396
        %432 = vmatprep.subr.mxu0 %v395
        %433 = vmatpush1.msra.mxu0 %v394
        %434 = vmatprep.subr.mxu0 %v393
        %435 = vmatpush1.msra.mxu0 %v392
        %436 = vmatprep.subr.mxu0 %v391
        %437 = vmatpush1.msra.mxu0 %v390
        %438 = vmatprep.subr.mxu0 %v389
        %439 = vmatpush1.msra.mxu0 %v388
        %440 = vmatprep.subr.mxu0 0.0
        %441 = vmatpush2.msra.mxu0 0.0
        %442 = vmatprep.subr.mxu0 0.0
        %443 = vmatpush2.msra.mxu0 0.0
        %444 = vmatprep.subr.mxu0 0.0
        %445 = vmatpush2.msra.mxu0 0.0
        %446 = vmatprep.subr.mxu0 0.0
        %447 = vmatpush2.msra.mxu0 0.0
        %448 = vmatprep.subr.mxu0 0.0
        %449 = vmatpush2.msra.mxu0 0.0
        %450 = vmatprep.subr.mxu0 0.0
        %451 = vmatpush2.msra.mxu0 0.0
        %452 = vmatprep.subr.mxu0 0.0
        %453 = vmatpush2.msra.mxu0 0.0
        %454 = vmatprep.subr.mxu0 0.0
        %455 = vmatpush2.msra.mxu0 0.0
        %456 = vmatprep.subr.mxu0 0.0
        %457 = vmatpush2.msra.mxu0 0.0
        %458 = vmatprep.subr.mxu0 0.0
        %459 = vmatpush2.msra.mxu0 0.0
        %460 = vmatprep.subr.mxu0 0.0
        %461 = vmatpush2.msra.mxu0 0.0
        %462 = vmatprep.subr.mxu0 0.0
        %463 = vmatpush2.msra.mxu0 0.0
        %464 = vmatprep.subr.mxu0 0.0
        %465 = vmatpush2.msra.mxu0 0.0
        %466 = vmatprep.subr.mxu0 0.0
        %467 = vmatpush2.msra.mxu0 0.0
        %468 = vmatprep.subr.mxu0 0.0
        %469 = vmatpush2.msra.mxu0 0.0
        %470 = vmatprep.subr.mxu0 0.0
        %471 = vmatpush2.msra.mxu0 0.0
        %472 = vmatprep.mubr.f32.mxu0 0.0
        %473 = vmatmul.mubr.f32.gmra.mxu0 %v406
        %v474 = vpop.f32.mrf.mxu0
        %v475 = vadd.f32 0.0, %v474
        %v476 = vpop.f32.mrf.mxu0
        %v477 = vadd.f32 0.0, %v476
        %478 = vdwg.mxu0
        %v480 = vsel %vm404, %v370, 0
        %482 = vmatprep.subr.mxu0 0.0
        %483 = vmatpush1.msra.mxu0 0.0
        %484 = vmatprep.subr.mxu0 0.0
        %485 = vmatpush1.msra.mxu0 0.0
        %486 = vmatprep.subr.mxu0 0.0
        %487 = vmatpush1.msra.mxu0 0.0
        %488 = vmatprep.subr.mxu0 0.0
        %489 = vmatpush1.msra.mxu0 0.0
        %490 = vmatprep.subr.mxu0 0.0
        %491 = vmatpush1.msra.mxu0 0.0
        %492 = vmatprep.subr.mxu0 0.0
        %493 = vmatpush1.msra.mxu0 0.0
        %494 = vmatprep.subr.mxu0 0.0
        %495 = vmatpush1.msra.mxu0 0.0
        %496 = vmatprep.subr.mxu0 0.0
        %497 = vmatpush1.msra.mxu0 0.0
        %498 = vmatprep.subr.mxu0 %v386
        %499 = vmatpush1.msra.mxu0 %v385
        %500 = vmatprep.subr.mxu0 %v384
        %501 = vmatpush1.msra.mxu0 %v383
        %502 = vmatprep.subr.mxu0 %v382
        %503 = vmatpush1.msra.mxu0 %v381
        %504 = vmatprep.subr.mxu0 %v380
        %505 = vmatpush1.msra.mxu0 %v379
        %506 = vmatprep.subr.mxu0 %v378
        %507 = vmatpush1.msra.mxu0 %v377
        %508 = vmatprep.subr.mxu0 %v376
        %509 = vmatpush1.msra.mxu0 %v375
        %510 = vmatprep.subr.mxu0 %v374
        %511 = vmatpush1.msra.mxu0 %v373
        %512 = vmatprep.subr.mxu0 %v372
        %513 = vmatpush1.msra.mxu0 %v371
        %514 = vmatprep.subr.mxu0 0.0
        %515 = vmatpush2.msra.mxu0 0.0
        %516 = vmatprep.subr.mxu0 0.0
        %517 = vmatpush2.msra.mxu0 0.0
        %518 = vmatprep.subr.mxu0 0.0
        %519 = vmatpush2.msra.mxu0 0.0
        %520 = vmatprep.subr.mxu0 0.0
        %521 = vmatpush2.msra.mxu0 0.0
        %522 = vmatprep.subr.mxu0 0.0
        %523 = vmatpush2.msra.mxu0 0.0
        %524 = vmatprep.subr.mxu0 0.0
        %525 = vmatpush2.msra.mxu0 0.0
        %526 = vmatprep.subr.mxu0 0.0
        %527 = vmatpush2.msra.mxu0 0.0
        %528 = vmatprep.subr.mxu0 0.0
        %529 = vmatpush2.msra.mxu0 0.0
        %530 = vmatprep.subr.mxu0 0.0
        %531 = vmatpush2.msra.mxu0 0.0
        %532 = vmatprep.subr.mxu0 0.0
        %533 = vmatpush2.msra.mxu0 0.0
        %534 = vmatprep.subr.mxu0 0.0
        %535 = vmatpush2.msra.mxu0 0.0
        %536 = vmatprep.subr.mxu0 0.0
        %537 = vmatpush2.msra.mxu0 0.0
        %538 = vmatprep.subr.mxu0 0.0
        %539 = vmatpush2.msra.mxu0 0.0
        %540 = vmatprep.subr.mxu0 0.0
        %541 = vmatpush2.msra.mxu0 0.0
        %542 = vmatprep.subr.mxu0 0.0
        %543 = vmatpush2.msra.mxu0 0.0
        %544 = vmatprep.subr.mxu0 0.0
        %545 = vmatpush2.msra.mxu0 0.0
        %546 = vmatprep.mubr.f32.mxu0 0.0
        %547 = vmatmul.mubr.f32.gmra.mxu0 %v480
        %v548 = vpop.f32.mrf.mxu0
        %v549 = vadd.f32 %v475, %v548
        %v550 = vpop.f32.mrf.mxu0
        %v551 = vadd.f32 %v477, %v550
        %552 = vdwg.mxu0
        %v553 = vld [vmem:[%s4] sm:$0x3]
        %v555 = vlaneseq
        %v556 = vshrl.u32 %v555, 7
        %v557 = vsub.s32 0, %v556
        %v558 = vrot.slane %v553, %v557
        %v559 = vlaneseq
        %v560 = vshrl.u32 %v559, 7
        %v561 = vsub.s32 1, %v560
        %v562 = vrot.slane %v553, %v561
        %v565 = vadd.f32 %v549, %v558
        %v566 = vadd.f32 %v551, %v562
        %v567 = vmax.f32 %v565, 0.0
        %v568 = vmax.f32 %v566, 0.0
        %v569 = vld [vmem:[%s328] sm:$0xff]
        %v570 = vld [vmem:[%s328 + $0x8] sm:$0xff]
        %v571 = vld [vmem:[%s328 + $0x10] sm:$0xff]
        %v572 = vld [vmem:[%s328 + $0x18] sm:$0xff]
        %v573 = vld [vmem:[%s328 + $0x20] sm:$0xff]
        %v574 = vld [vmem:[%s328 + $0x28] sm:$0xff]
        %v575 = vld [vmem:[%s328 + $0x30] sm:$0xff]
        %v576 = vld [vmem:[%s328 + $0x38] sm:$0xff]
        %v577 = vld [vmem:[%s328 + $0x40] sm:$0xff]
        %v578 = vld [vmem:[%s328 + $0x48] sm:$0xff]
        %v579 = vld [vmem:[%s328 + $0x50] sm:$0xff]
        %v580 = vld [vmem:[%s328 + $0x58] sm:$0xff]
        %v581 = vld [vmem:[%s328 + $0x60] sm:$0xff]
        %v582 = vld [vmem:[%s328 + $0x68] sm:$0xff]
        %v583 = vld [vmem:[%s328 + $0x70] sm:$0xff]
        %v584 = vld [vmem:[%s328 + $0x78] sm:$0xff]
        %v585 = vld [vmem:[%s328 + $0x80] sm:$0xff]
        %v586 = vld [vmem:[%s328 + $0x88] sm:$0xff]
        %v587 = vld [vmem:[%s328 + $0x90] sm:$0xff]
        %v588 = vld [vmem:[%s328 + $0x98] sm:$0xff]
        %v589 = vld [vmem:[%s328 + $0xa0] sm:$0xff]
        %v590 = vld [vmem:[%s328 + $0xa8] sm:$0xff]
        %v591 = vld [vmem:[%s328 + $0xb0] sm:$0xff]
        %v592 = vld [vmem:[%s328 + $0xb8] sm:$0xff]
        %v593 = vld [vmem:[%s328 + $0xc0] sm:$0xff]
        %v594 = vld [vmem:[%s328 + $0xc8] sm:$0xff]
        %v595 = vld [vmem:[%s328 + $0xd0] sm:$0xff]
        %v596 = vld [vmem:[%s328 + $0xd8] sm:$0xff]
        %v597 = vld [vmem:[%s328 + $0xe0] sm:$0xff]
        %v598 = vld [vmem:[%s328 + $0xe8] sm:$0xff]
        %v599 = vld [vmem:[%s328 + $0xf0] sm:$0xff]
        %v600 = vld [vmem:[%s328 + $0xf8] sm:$0xff]
        %v601 = vld [vmem:[%s328 + $0x100] sm:$0xff]
        %v602 = vld [vmem:[%s328 + $0x108] sm:$0xff]
        %v603 = vld [vmem:[%s328 + $0x110] sm:$0xff]
        %v604 = vld [vmem:[%s328 + $0x118] sm:$0xff]
        %v605 = vld [vmem:[%s328 + $0x120] sm:$0xff]
        %v606 = vld [vmem:[%s328 + $0x128] sm:$0xff]
        %v607 = vld [vmem:[%s328 + $0x130] sm:$0xff]
        %v608 = vld [vmem:[%s328 + $0x138] sm:$0xff]
        %v609 = vld [vmem:[%s328 + $0x140] sm:$0xff]
        %v610 = vld [vmem:[%s328 + $0x148] sm:$0xff]
        %v611 = vld [vmem:[%s328 + $0x150] sm:$0xff]
        %v612 = vld [vmem:[%s328 + $0x158] sm:$0xff]
        %v613 = vld [vmem:[%s328 + $0x160] sm:$0xff]
        %v614 = vld [vmem:[%s328 + $0x168] sm:$0xff]
        %v615 = vld [vmem:[%s328 + $0x170] sm:$0xff]
        %v616 = vld [vmem:[%s328 + $0x178] sm:$0xff]
        %v617 = vld [vmem:[%s328 + $0x180] sm:$0xff]
        %v618 = vld [vmem:[%s328 + $0x188] sm:$0xff]
        %v619 = vld [vmem:[%s328 + $0x190] sm:$0xff]
        %v620 = vld [vmem:[%s328 + $0x198] sm:$0xff]
        %v621 = vld [vmem:[%s328 + $0x1a0] sm:$0xff]
        %v622 = vld [vmem:[%s328 + $0x1a8] sm:$0xff]
        %v623 = vld [vmem:[%s328 + $0x1b0] sm:$0xff]
        %v624 = vld [vmem:[%s328 + $0x1b8] sm:$0xff]
        %v625 = vld [vmem:[%s328 + $0x1c0] sm:$0xff]
        %v626 = vld [vmem:[%s328 + $0x1c8] sm:$0xff]
        %v627 = vld [vmem:[%s328 + $0x1d0] sm:$0xff]
        %v628 = vld [vmem:[%s328 + $0x1d8] sm:$0xff]
        %v629 = vld [vmem:[%s328 + $0x1e0] sm:$0xff]
        %v630 = vld [vmem:[%s328 + $0x1e8] sm:$0xff]
        %v631 = vld [vmem:[%s328 + $0x1f0] sm:$0xff]
        %v632 = vld [vmem:[%s328 + $0x1f8] sm:$0xff]
        %v633 = vld [vmem:[%s328 + $0x200] sm:$0xff]
        %v634 = vld [vmem:[%s328 + $0x208] sm:$0xff]
        %v635 = vld [vmem:[%s328 + $0x210] sm:$0xff]
        %v636 = vld [vmem:[%s328 + $0x218] sm:$0xff]
        %v637 = vld [vmem:[%s328 + $0x220] sm:$0xff]
        %v638 = vld [vmem:[%s328 + $0x228] sm:$0xff]
        %v639 = vld [vmem:[%s328 + $0x230] sm:$0xff]
        %v640 = vld [vmem:[%s328 + $0x238] sm:$0xff]
        %v641 = vld [vmem:[%s328 + $0x240] sm:$0xff]
        %v642 = vld [vmem:[%s328 + $0x248] sm:$0xff]
        %v643 = vld [vmem:[%s328 + $0x250] sm:$0xff]
        %v644 = vld [vmem:[%s328 + $0x258] sm:$0xff]
        %v645 = vld [vmem:[%s328 + $0x260] sm:$0xff]
        %v646 = vld [vmem:[%s328 + $0x268] sm:$0xff]
        %v647 = vld [vmem:[%s328 + $0x270] sm:$0xff]
        %v648 = vld [vmem:[%s328 + $0x278] sm:$0xff]
        %v649 = vld [vmem:[%s328 + $0x280] sm:$0xff]
        %v650 = vld [vmem:[%s328 + $0x288] sm:$0xff]
        %v651 = vld [vmem:[%s328 + $0x290] sm:$0xff]
        %v652 = vld [vmem:[%s328 + $0x298] sm:$0xff]
        %v653 = vld [vmem:[%s328 + $0x2a0] sm:$0xff]
        %v654 = vld [vmem:[%s328 + $0x2a8] sm:$0xff]
        %v655 = vld [vmem:[%s328 + $0x2b0] sm:$0xff]
        %v656 = vld [vmem:[%s328 + $0x2b8] sm:$0xff]
        %v657 = vld [vmem:[%s328 + $0x2c0] sm:$0xff]
        %v658 = vld [vmem:[%s328 + $0x2c8] sm:$0xff]
        %v659 = vld [vmem:[%s328 + $0x2d0] sm:$0xff]
        %v660 = vld [vmem:[%s328 + $0x2d8] sm:$0xff]
        %v661 = vld [vmem:[%s328 + $0x2e0] sm:$0xff]
        %v662 = vld [vmem:[%s328 + $0x2e8] sm:$0xff]
        %v663 = vld [vmem:[%s328 + $0x2f0] sm:$0xff]
        %v664 = vld [vmem:[%s328 + $0x2f8] sm:$0xff]
        %v665 = vld [vmem:[%s367] sm:$0x7]
        %v667 = vlaneseq
        %v668 = vshrl.u32 %v667, 7
        %v669 = vsub.s32 0, %v668
        %v670 = vrot.slane %v665, %v669
        %v671 = vlaneseq
        %v672 = vshrl.u32 %v671, 7
        %v673 = vsub.s32 1, %v672
        %v674 = vrot.slane %v665, %v673
        %v675 = vlaneseq
        %v676 = vshrl.u32 %v675, 7
        %v677 = vsub.s32 2, %v676
        %v678 = vrot.slane %v665, %v677
        %682 = vmatprep.subr.mxu0 %v615
        %683 = vmatpush1.msra.mxu0 %v614
        %684 = vmatprep.subr.mxu0 %v612
        %685 = vmatpush1.msra.mxu0 %v611
        %686 = vmatprep.subr.mxu0 %v609
        %687 = vmatpush1.msra.mxu0 %v608
        %688 = vmatprep.subr.mxu0 %v606
        %689 = vmatpush1.msra.mxu0 %v605
        %690 = vmatprep.subr.mxu0 %v603
        %691 = vmatpush1.msra.mxu0 %v602
        %692 = vmatprep.subr.mxu0 %v600
        %693 = vmatpush1.msra.mxu0 %v599
        %694 = vmatprep.subr.mxu0 %v597
        %695 = vmatpush1.msra.mxu0 %v596
        %696 = vmatprep.subr.mxu0 %v594
        %697 = vmatpush1.msra.mxu0 %v593
        %698 = vmatprep.subr.mxu0 %v591
        %699 = vmatpush1.msra.mxu0 %v590
        %700 = vmatprep.subr.mxu0 %v588
        %701 = vmatpush1.msra.mxu0 %v587
        %702 = vmatprep.subr.mxu0 %v585
        %703 = vmatpush1.msra.mxu0 %v584
        %704 = vmatprep.subr.mxu0 %v582
        %705 = vmatpush1.msra.mxu0 %v581
        %706 = vmatprep.subr.mxu0 %v579
        %707 = vmatpush1.msra.mxu0 %v578
        %708 = vmatprep.subr.mxu0 %v576
        %709 = vmatpush1.msra.mxu0 %v575
        %710 = vmatprep.subr.mxu0 %v573
        %711 = vmatpush1.msra.mxu0 %v572
        %712 = vmatprep.subr.mxu0 %v570
        %713 = vmatpush1.msra.mxu0 %v569
        %714 = vmatprep.subr.mxu0 %v663
        %715 = vmatpush2.msra.mxu0 %v662
        %716 = vmatprep.subr.mxu0 %v660
        %717 = vmatpush2.msra.mxu0 %v659
        %718 = vmatprep.subr.mxu0 %v657
        %719 = vmatpush2.msra.mxu0 %v656
        %720 = vmatprep.subr.mxu0 %v654
        %721 = vmatpush2.msra.mxu0 %v653
        %722 = vmatprep.subr.mxu0 %v651
        %723 = vmatpush2.msra.mxu0 %v650
        %724 = vmatprep.subr.mxu0 %v648
        %725 = vmatpush2.msra.mxu0 %v647
        %726 = vmatprep.subr.mxu0 %v645
        %727 = vmatpush2.msra.mxu0 %v644
        %728 = vmatprep.subr.mxu0 %v642
        %729 = vmatpush2.msra.mxu0 %v641
        %730 = vmatprep.subr.mxu0 %v639
        %731 = vmatpush2.msra.mxu0 %v638
        %732 = vmatprep.subr.mxu0 %v636
        %733 = vmatpush2.msra.mxu0 %v635
        %734 = vmatprep.subr.mxu0 %v633
        %735 = vmatpush2.msra.mxu0 %v632
        %736 = vmatprep.subr.mxu0 %v630
        %737 = vmatpush2.msra.mxu0 %v629
        %738 = vmatprep.subr.mxu0 %v627
        %739 = vmatpush2.msra.mxu0 %v626
        %740 = vmatprep.subr.mxu0 %v624
        %741 = vmatpush2.msra.mxu0 %v623
        %742 = vmatprep.subr.mxu0 %v621
        %743 = vmatpush2.msra.mxu0 %v620
        %744 = vmatprep.subr.mxu0 %v618
        %745 = vmatpush2.msra.mxu0 %v617
        %746 = vmatprep.mubr.f32.mxu0 %v568
        %747 = vmatmul.mubr.f32.gmra.mxu0 %v567
        %v748 = vpop.f32.mrf.mxu0
        %v749 = vadd.f32 %v670, %v748
        %v750 = vpop.f32.mrf.mxu0
        %v751 = vadd.f32 %v674, %v750
        %752 = vdwg.mxu0
        %753 = vmatprep.subr.mxu0 0.0
        %754 = vmatpush1.msra.mxu0 %v616
        %755 = vmatprep.subr.mxu0 0.0
        %756 = vmatpush1.msra.mxu0 %v613
        %757 = vmatprep.subr.mxu0 0.0
        %758 = vmatpush1.msra.mxu0 %v610
        %759 = vmatprep.subr.mxu0 0.0
        %760 = vmatpush1.msra.mxu0 %v607
        %761 = vmatprep.subr.mxu0 0.0
        %762 = vmatpush1.msra.mxu0 %v604
        %763 = vmatprep.subr.mxu0 0.0
        %764 = vmatpush1.msra.mxu0 %v601
        %765 = vmatprep.subr.mxu0 0.0
        %766 = vmatpush1.msra.mxu0 %v598
        %767 = vmatprep.subr.mxu0 0.0
        %768 = vmatpush1.msra.mxu0 %v595
        %769 = vmatprep.subr.mxu0 0.0
        %770 = vmatpush1.msra.mxu0 %v592
        %771 = vmatprep.subr.mxu0 0.0
        %772 = vmatpush1.msra.mxu0 %v589
        %773 = vmatprep.subr.mxu0 0.0
        %774 = vmatpush1.msra.mxu0 %v586
        %775 = vmatprep.subr.mxu0 0.0
        %776 = vmatpush1.msra.mxu0 %v583
        %777 = vmatprep.subr.mxu0 0.0
        %778 = vmatpush1.msra.mxu0 %v580
        %779 = vmatprep.subr.mxu0 0.0
        %780 = vmatpush1.msra.mxu0 %v577
        %781 = vmatprep.subr.mxu0 0.0
        %782 = vmatpush1.msra.mxu0 %v574
        %783 = vmatprep.subr.mxu0 0.0
        %784 = vmatpush1.msra.mxu0 %v571
        %785 = vmatprep.subr.mxu0 0.0
        %786 = vmatpush2.msra.mxu0 %v664
        %787 = vmatprep.subr.mxu0 0.0
        %788 = vmatpush2.msra.mxu0 %v661
        %789 = vmatprep.subr.mxu0 0.0
        %790 = vmatpush2.msra.mxu0 %v658
        %791 = vmatprep.subr.mxu0 0.0
        %792 = vmatpush2.msra.mxu0 %v655
        %793 = vmatprep.subr.mxu0 0.0
        %794 = vmatpush2.msra.mxu0 %v652
        %795 = vmatprep.subr.mxu0 0.0
        %796 = vmatpush2.msra.mxu0 %v649
        %797 = vmatprep.subr.mxu0 0.0
        %798 = vmatpush2.msra.mxu0 %v646
        %799 = vmatprep.subr.mxu0 0.0
        %800 = vmatpush2.msra.mxu0 %v643
        %801 = vmatprep.subr.mxu0 0.0
        %802 = vmatpush2.msra.mxu0 %v640
        %803 = vmatprep.subr.mxu0 0.0
        %804 = vmatpush2.msra.mxu0 %v637
        %805 = vmatprep.subr.mxu0 0.0
        %806 = vmatpush2.msra.mxu0 %v634
        %807 = vmatprep.subr.mxu0 0.0
        %808 = vmatpush2.msra.mxu0 %v631
        %809 = vmatprep.subr.mxu0 0.0
        %810 = vmatpush2.msra.mxu0 %v628
        %811 = vmatprep.subr.mxu0 0.0
        %812 = vmatpush2.msra.mxu0 %v625
        %813 = vmatprep.subr.mxu0 0.0
        %814 = vmatpush2.msra.mxu0 %v622
        %815 = vmatprep.subr.mxu0 0.0
        %816 = vmatpush2.msra.mxu0 %v619
        %817 = vmatprep.mubr.f32.mxu0 %v568
        %818 = vmatmul.mubr.f32.gmra.mxu0 %v567
        %v819 = vpop.f32.mrf.mxu0
        %v820 = vadd.f32 %v678, %v819
        %v821 = vpop.f32.mrf.mxu0
        %822 = vdwg.mxu0
        %v823 = vtanh.pop %v749
        %v824 = vtanh.pop %v751
        %v825 = vtanh.pop %v820
        %v829 = vcombine.low %v823, %v824
        %v831 = vunpack.c.l.s4 1983009808
        %v832 = vunpack.c.0.s8 %v831
        %v833 = vlaneseq
        %v834 = vshrl.u32 %v833, 7
        %v835 = vsub.s32 %v832, %v834
        %v836 = vrot.slane %v829, %v835
        %v838 = vunpack.c.l.s4 1983009808
        %v839 = vunpack.c.0.s8 %v838
        %v840 = vlaneseq
        %v841 = vshrl.u32 %v840, 7
        %v842 = vsub.s32 %v839, %v841
        %v843 = vrot.slane %v825, %v842
        %v844 = vcombine.low %v836, %v843
        %846 = vst [vmem:[%s362] sm:$0x3f] %v844
        %s847 = sand.u32 %s189, 1
        %s848 = scalar_lea.sflag [#allocation4], %s847
        %s849 = sand.u32 %s189, 1
        %s850 = smul.addr %s849, 6
        %s851 = scalar_lea.vmem [#allocation11], %s850
        // Predicated region
        $region69: #{tpu_custom_call.1} parent=47 // pred_check
          %p852 = pneg %p199
        $region70: #{tpu_custom_call.1} parent=47 // pred_check_branch
          %854 = sbr.rel (%p852) target = $region72
        $region71: #{tpu_custom_call.1} parent=47 // pred_region
          %s855 = smul.u32 3, %s24
          %s857 = ssub.s32 96, 96
          %858 = vsyncadd %s848, %s857
          %s859 = smul.addr %s855, 32
          %s860 = scalar_lea.hbm %s7, %s859
          %s862 = sshll.u32 %s851, 4
          %s863 = int_to_ptr.vmem [resolvable:$true] %s862
          %865 = dma.vmem_to_hbm [thread:$0]  %s863, 96, %s860, %s848
        $region72: #{tpu_custom_call.1} parent=47 // pred_fallthru
          _
      $region48: #{tpu_custom_call.1} parent=5 // pred_fallthru
        _
      %p866 = scmp.le.s32.totalorder 2, %s19
      // Predicated region
      $region73: #{tpu_custom_call.1} parent=5 // pred_check
        %p867 = pneg %p866
      $region74: #{tpu_custom_call.1} parent=5 // pred_check_branch
        %869 = sbr.rel (%p867) target = $region76
      $region75: #{tpu_custom_call.1} parent=5 // pred_region
        %s870 = ssub.s32 %s19, 2
        // Predicated region
        $region77: #{tpu_custom_call.1} parent=75 // pred_check
          %p871 = pneg %p205
        $region78: #{tpu_custom_call.1} parent=75 // pred_check_branch
          %873 = sbr.rel (%p871) target = $region80
        $region79: #{tpu_custom_call.1} parent=75 // pred_region
          %s874 = sand.u32 %s190, 1
          %s875 = scalar_lea.sflag [#allocation4], %s874
          %s876 = sand.u32 %s190, 1
          %s877 = smul.addr %s876, 6
          %s878 = scalar_lea.vmem [#allocation11], %s877
          %879 = dma.done %s875, 96
        $region80: #{tpu_custom_call.1} parent=75 // pred_fallthru
          _
      $region76: #{tpu_custom_call.1} parent=5 // pred_fallthru
        _
    $region6: #{tpu_custom_call.1} parent=1 // loop_footer
      %s23 = sadd.s32 1, %s19
    $region7: #{tpu_custom_call.1} parent=1 // loop_footer_branch
      %18 = sbr.rel target = $region3
    $region8: #{tpu_custom_call.1} parent=1 // loop_exit
      _
    %880 = vsyncpa [#allocation3], 1
    %s881 = scalar_lea.sflag [#allocation3], 1
    %882 = vsyncpa %s881, 1
    %883 = vsyncpa [#allocation6], 1
    %884 = vsyncpa [#allocation9], 1
    %885 = vsyncpa [#allocation4], 1
    %s886 = scalar_lea.sflag [#allocation4], 1
    %887 = vsyncpa %s886, 1

</llo_original>
